<compile_context>
chip_gen: v7x
topology: tpu7x:2x2x1
jax: 0.10.0
libtpu: 0.0.40
codegen_flags: <defaults>
</compile_context>

<pallas_src>
import functools
import math

import jax
import jax.numpy as jnp
from jax import lax
from jax.experimental import pallas as pl
from jax.experimental.pallas import tpu as pltpu


VMEM_LIMIT = 48 * 1024 * 1024   # safe on v5e/v6e (128 MiB phys) and v7x (64 MiB phys)


# ----------------------------- tiling helpers -----------------------------

def _pick_tile(dim, target, mult):
    """Largest tile <= target that divides dim and is a multiple of `mult`;
    falls back to the full dim (block == array extent is always legal)."""
    if dim <= target:
        return dim
    t = (target // mult) * mult
    while t >= mult:
        if dim % t == 0:
            return t
        t -= mult
    return dim
    # TODO(synk): for awkward B*T (not divisible by any multiple of 8 <= target) pad the
    # row dimension instead of falling back to the full array extent.


GELU_C = 0.7978845608028654  # sqrt(2/pi)


def _gelu_new(x):
    # GPT-2 "gelu_new": 0.5*x*(1+tanh(sqrt(2/pi)*(x + 0.044715*x^3)))
    return 0.5 * x * (1.0 + jnp.tanh(GELU_C * (x + 0.044715 * x * x * x)))


# ---------------- fused (LayerNorm) + matmul + bias (+gelu) (+residual) ----------------

def _fused_matmul_kernel(*refs, has_ln, has_res, activation, eps):
    it = iter(refs)
    x_ref = next(it)
    w_ref = next(it)
    b_ref = next(it)
    g_ref = next(it) if has_ln else None
    be_ref = next(it) if has_ln else None
    r_ref = next(it) if has_res else None
    o_ref = next(it)
    xn_ref = next(it) if has_ln else None   # VMEM scratch: LN(x) cached per row tile

    if has_ln:
        @pl.when(pl.program_id(1) == 0)
        def _():
            x = x_ref[...].astype(jnp.float32)           # LN statistics in f32
            mu = jnp.mean(x, axis=-1, keepdims=True)
            var = jnp.mean(jnp.square(x - mu), axis=-1, keepdims=True)
            xn = (x - mu) * lax.rsqrt(var + eps) * g_ref[...] + be_ref[...]
            xn_ref[...] = xn.astype(jnp.bfloat16)
        xb = xn_ref[...]                                  # reused for every column tile
    else:
        xb = x_ref[...].astype(jnp.bfloat16)

    # bf16 operands, f32 accumulation on the MXU
    y = jnp.dot(xb, w_ref[...], preferred_element_type=jnp.float32)
    y = y + b_ref[...]
    if activation == "gelu_new":
        y = _gelu_new(y)
    if has_res:
        y = y + r_ref[...].astype(jnp.float32)            # fused residual add
    o_ref[...] = y.astype(o_ref.dtype)


def fused_matmul(x2d, w, b_row, *, ln=None, residual=None, activation=None,
                 out_dtype=jnp.bfloat16, eps=1e-5):
    M, K = x2d.shape
    K2, N = w.shape
    assert K == K2
    tm = _pick_tile(M, 512, 8)
    tn = _pick_tile(N, 512, 128)
    grid = (M // tm, N // tn)

    in_specs = [
        pl.BlockSpec((tm, K), lambda i, j: (i, 0)),
        pl.BlockSpec((K, tn), lambda i, j: (0, j)),
        pl.BlockSpec((1, tn), lambda i, j: (0, j)),
    ]
    inputs = [x2d, w, b_row]
    if ln is not None:
        g_row, be_row = ln
        in_specs += [pl.BlockSpec((1, K), lambda i, j: (0, 0)),
                     pl.BlockSpec((1, K), lambda i, j: (0, 0))]
        inputs += [g_row, be_row]
    if residual is not None:
        in_specs += [pl.BlockSpec((tm, tn), lambda i, j: (i, j))]
        inputs += [residual]

    scratch = [pltpu.VMEM((tm, K), jnp.bfloat16)] if ln is not None else []
    # LN cache persists across the column axis -> it must iterate sequentially.
    semantics = ("parallel", "arbitrary") if ln is not None else ("parallel", "parallel")

    return pl.pallas_call(
        functools.partial(_fused_matmul_kernel, has_ln=ln is not None,
                          has_res=residual is not None, activation=activation, eps=eps),
        out_shape=jax.ShapeDtypeStruct((M, N), out_dtype),
        grid=grid,
        in_specs=in_specs,
        out_specs=pl.BlockSpec((tm, tn), lambda i, j: (i, j)),
        scratch_shapes=scratch,
        compiler_params=pltpu.CompilerParams(dimension_semantics=semantics,
                                             vmem_limit_bytes=VMEM_LIMIT),
    )(*inputs)


# ----------------------------- flash attention -----------------------------

def _choose_head_group(H, hd):
    """Smallest #heads per grid step such that the column block is 128-lane dense."""
    for hpg in range(1, H + 1):
        if H % hpg == 0 and (hpg * hd) % 128 == 0:
            return hpg
    return None


def _flash_attn_kernel(q_ref, k_ref, v_ref, mask_ref, o_ref, m_sc, l_sc, acc_sc,
                       *, scale, tq, tk, hd, hpg):
    qi = pl.program_id(1)
    ki = pl.program_id(2)

    @pl.when(ki == 0)
    def _():
        m_sc[...] = jnp.full_like(m_sc, -1e30)
        l_sc[...] = jnp.zeros_like(l_sc)
        acc_sc[...] = jnp.zeros_like(acc_sc)

    # Skip KV tiles entirely above the causal diagonal (~2x less attention compute).
    @pl.when(ki * tk <= qi * tq + (tq - 1))
    def _():
        q = q_ref[...]                                    # (tq, hpg*hd) bf16
        k = k_ref[...]                                    # (tk, hpg*hd) bf16
        v = v_ref[...]
        pad = (1.0 - mask_ref[0].astype(jnp.float32)) * (-1e9)           # (1, tk)
        q_pos = qi * tq + lax.broadcasted_iota(jnp.int32, (tq, tk), 0)
        k_pos = ki * tk + lax.broadcasted_iota(jnp.int32, (tq, tk), 1)
        causal_ok = k_pos <= q_pos

        for g in range(hpg):                              # static loop over heads in group
            sl = slice(g * hd, (g + 1) * hd)
            s = lax.dot_general(q[:, sl], k[:, sl], (((1,), (1,)), ((), ())),
                                preferred_element_type=jnp.float32) * scale  # (tq, tk)
            s = jnp.where(causal_ok, s + pad, -1e9)
            m_prev = m_sc[g]
            m_new = jnp.maximum(m_prev, jnp.max(s, axis=-1, keepdims=True))
            alpha = jnp.exp(m_prev - m_new)
            p = jnp.exp(s - m_new)
            l_sc[g] = alpha * l_sc[g] + jnp.sum(p, axis=-1, keepdims=True)
            acc_sc[:, sl] = alpha * acc_sc[:, sl] + jnp.dot(
                p.astype(jnp.bfloat16), v[:, sl], preferred_element_type=jnp.float32)
            m_sc[g] = m_new

    @pl.when(ki == pl.num_programs(2) - 1)
    def _():
        parts = []
        for g in range(hpg):
            inv = pl.reciprocal(l_sc[g], approx=True)     # (tq, 1)
            parts.append(jnp.broadcast_to(inv, (tq, hd)))
        inv_full = parts[0] if hpg == 1 else jnp.concatenate(parts, axis=1)
        o_ref[...] = (acc_sc[...] * inv_full).astype(o_ref.dtype)   # lane-dense store


def flash_attention(qkv, pad_mask, *, B, T, H, hd, scale):
    """qkv: (B*T, 3*D) bf16 packed [Q|K|V]; pad_mask: (B, 1, T) f32 of {0,1}.
    Returns attention output in (B*T, D) layout (heads already merged)."""
    D = H * hd
    BT = B * T
    hpg = _choose_head_group(H, hd)
    if hpg is None:
        # TODO(synk): tiny head dims with no 128-lane head grouping fall back to an
        # explicit qkv split (extra HBM copies) so block widths equal the array width.
        hpg = H
        q_in, k_in, v_in = qkv[:, :D], qkv[:, D:2 * D], qkv[:, 2 * D:]
        q_off = k_off = v_off = 0
    else:
        q_in = k_in = v_in = qkv            # same buffer, three column windows
        q_off, k_off, v_off = 0, H // hpg, 2 * (H // hpg)

    gw = hpg * hd                           # column-block width (lane dense when possible)
    n_hg = H // hpg
    tq = _pick_tile(T, 128, 8)
    tk = _pick_tile(T, 256, 128)
    nq, nk = T // tq, T // tk
    grid = (B * n_hg, nq, nk)               # leading axes parallel (megacore on v7x)

    def qo_map(bg, qi, ki):
        return (bg // n_hg * nq + qi, bg % n_hg)

    def make_kv_map(off):
        def f(bg, qi, ki):
            kmax = (qi * tq + tq - 1) // tk          # last useful KV tile for this q tile
            return (bg // n_hg * nk + jnp.minimum(ki, kmax), off + bg % n_hg)
        return f

    def mask_map(bg, qi, ki):
        kmax = (qi * tq + tq - 1) // tk
        return (bg // n_hg, 0, jnp.minimum(ki, kmax))

    def q_map(bg, qi, ki):
        return (bg // n_hg * nq + qi, q_off + bg % n_hg)

    return pl.pallas_call(
        functools.partial(_flash_attn_kernel, scale=scale, tq=tq, tk=tk, hd=hd, hpg=hpg),
        out_shape=jax.ShapeDtypeStruct((BT, D), jnp.bfloat16),
        grid=grid,
        in_specs=[
            pl.BlockSpec((tq, gw), q_map),
            pl.BlockSpec((tk, gw), make_kv_map(k_off)),
            pl.BlockSpec((tk, gw), make_kv_map(v_off)),
            pl.BlockSpec((1, 1, tk), mask_map),
        ],
        out_specs=pl.BlockSpec((tq, gw), qo_map),
        scratch_shapes=[pltpu.VMEM((hpg, tq, 1), jnp.float32),
                        pltpu.VMEM((hpg, tq, 1), jnp.float32),
                        pltpu.VMEM((tq, gw), jnp.float32)],
        compiler_params=pltpu.CompilerParams(
            dimension_semantics=("parallel", "parallel", "arbitrary")),
    )(q_in, k_in, v_in, pad_mask)


# ------------- LM head: fused final-LN + tied matmul + online cross-entropy -------------

def _lm_head_kernel(x_ref, wte_ref, g_ref, b_ref, lbl_ref, logits_ref, nll_ref,
                    xn_sc, m_sc, l_sc, t_sc, *, tn, n_valid, eps):
    j = pl.program_id(1)

    @pl.when(j == 0)
    def _():
        # final LayerNorm computed once per row tile, cached in VMEM scratch
        x = x_ref[...].astype(jnp.float32)
        mu = jnp.mean(x, axis=-1, keepdims=True)
        var = jnp.mean(jnp.square(x - mu), axis=-1, keepdims=True)
        xn = (x - mu) * lax.rsqrt(var + eps) * g_ref[...] + b_ref[...]
        xn_sc[...] = xn.astype(jnp.bfloat16)
        m_sc[...] = jnp.full_like(m_sc, -1e30)
        l_sc[...] = jnp.zeros_like(l_sc)
        t_sc[...] = jnp.zeros_like(t_sc)

    # tied LM head: contract wte's LAST dim -> no materialized wte.T in HBM
    logits = lax.dot_general(xn_sc[...], wte_ref[...], (((1,), (1,)), ((), ())),
                             preferred_element_type=jnp.float32)         # (tm, tn)
    col = j * tn + lax.broadcasted_iota(jnp.int32, logits.shape, 1)
    if n_valid is not None:
        logits = jnp.where(col < n_valid, logits, -1e9)    # mask vocab padding
    logits_ref[...] = logits.astype(logits_ref.dtype)      # bf16 store (half the traffic)

    # fused cross-entropy: online log-sum-exp (f32) + target gather across the V axis
    m_prev = m_sc[...]
    m_new = jnp.maximum(m_prev, jnp.max(logits, axis=-1, keepdims=True))
    l_sc[...] = jnp.exp(m_prev - m_new) * l_sc[...] + \
        jnp.sum(jnp.exp(logits - m_new), axis=-1, keepdims=True)
    m_sc[...] = m_new
    hit = col == lbl_ref[...]
    t_sc[...] += jnp.sum(jnp.where(hit, logits, 0.0), axis=-1, keepdims=True)

    @pl.when(j == pl.num_programs(1) - 1)
    def _():
        nll_ref[...] = m_sc[...] + jnp.log(l_sc[...]) - t_sc[...]


def lm_head_with_loss(hf2d, wte_padded, lnf_g, lnf_b, labels_flat, n_valid_vocab, eps=1e-5):
    M, D = hf2d.shape
    Vp = wte_padded.shape[0]
    tm = _pick_tile(M, 1024, 8)          # larger row tile -> wte re-streamed fewer times
    tn = _pick_tile(Vp, 512, 128)
    grid = (M // tm, Vp // tn)
    n_valid = None if Vp == n_valid_vocab else n_valid_vocab

    logits, nll = pl.pallas_call(
        functools.partial(_lm_head_kernel, tn=tn, n_valid=n_valid, eps=eps),
        out_shape=(jax.ShapeDtypeStruct((M, Vp), jnp.bfloat16),
                   jax.ShapeDtypeStruct((M, 1), jnp.float32)),
        grid=grid,
        in_specs=[
            pl.BlockSpec((tm, D), lambda i, j: (i, 0)),
            pl.BlockSpec((tn, D), lambda i, j: (j, 0)),
            pl.BlockSpec((1, D), lambda i, j: (0, 0)),
            pl.BlockSpec((1, D), lambda i, j: (0, 0)),
            pl.BlockSpec((tm, 1), lambda i, j: (i, 0)),
        ],
        out_specs=(pl.BlockSpec((tm, tn), lambda i, j: (i, j)),
                   pl.BlockSpec((tm, 1), lambda i, j: (i, 0))),
        scratch_shapes=[pltpu.VMEM((tm, D), jnp.bfloat16),
                        pltpu.VMEM((tm, 1), jnp.float32),
                        pltpu.VMEM((tm, 1), jnp.float32),
                        pltpu.VMEM((tm, 1), jnp.float32)],
        compiler_params=pltpu.CompilerParams(
            dimension_semantics=("parallel", "arbitrary"),
            vmem_limit_bytes=VMEM_LIMIT),
    )(hf2d, wte_padded, lnf_g, lnf_b, labels_flat.reshape(M, 1).astype(jnp.int32))

    return logits, nll[:, 0]


# ----------------------------- parameter init -----------------------------

def init_gpt2_params(key, *, vocab, n_pos, d, n_layer, n_head):
    std = 0.02
    vp = ((vocab + 127) // 128) * 128           # vocab padded once (lane-dense LM head)
    keys = iter(jax.random.split(key, 2 + 4 * n_layer))

    def nrm(k, shape):
        return (jax.random.normal(k, shape, jnp.float32) * std).astype(jnp.bfloat16)

    wte = nrm(next(keys), (vocab, d))
    if vp != vocab:
        wte = jnp.pad(wte, ((0, vp - vocab), (0, 0)))

    params = {
        "config": {"vocab": vocab, "vocab_padded": vp, "n_pos": n_pos, "n_embd": d,
                   "n_layer": n_layer, "n_head": n_head},
        "wte": wte,
        "wpe": nrm(next(keys), (n_pos, d)),
        # LN params / biases stored pre-shaped (1, N) f32: no per-call reshape/cast ops.
        "lnf_g": jnp.ones((1, d), jnp.float32),
        "lnf_b": jnp.zeros((1, d), jnp.float32),
        "layers": [],
    }
    for _ in range(n_layer):
        params["layers"].append({
            "ln1_g": jnp.ones((1, d), jnp.float32), "ln1_b": jnp.zeros((1, d), jnp.float32),
            "attn_w": nrm(next(keys), (d, 3 * d)), "attn_b": jnp.zeros((1, 3 * d), jnp.float32),
            "proj_w": nrm(next(keys), (d, d)), "proj_b": jnp.zeros((1, d), jnp.float32),
            "ln2_g": jnp.ones((1, d), jnp.float32), "ln2_b": jnp.zeros((1, d), jnp.float32),
            "fc_w": nrm(next(keys), (d, 4 * d)), "fc_b": jnp.zeros((1, 4 * d), jnp.float32),
            "mlp_proj_w": nrm(next(keys), (4 * d, d)), "mlp_proj_b": jnp.zeros((1, d), jnp.float32),
        })
    return params


# --------------------- forward (GPT2LMHeadModel semantics) ---------------------

def gpt2_forward(params, input_ids, attention_mask=None, labels=None):
    cfg = params["config"]
    B, T = input_ids.shape
    D, H, V = cfg["n_embd"], cfg["n_head"], cfg["vocab"]
    hd = D // H
    BT = B * T

    # embeddings (gather / broadcast add in plain JAX); residual stream kept in f32
    tok = jnp.take(params["wte"], input_ids, axis=0).astype(jnp.float32)       # (B,T,D)
    h2d = (tok + params["wpe"][:T].astype(jnp.float32)[None, :, :]).reshape(BT, D)

    if attention_mask is None:
        pad_mask = jnp.ones((B, 1, T), jnp.float32)
    else:
        pad_mask = attention_mask.astype(jnp.float32).reshape(B, 1, T)

    scale = 1.0 / math.sqrt(hd)

    for layer in params["layers"]:
        # LN1 fused into QKV projection -> packed (BT, 3D) bf16 buffer
        qkv = fused_matmul(h2d, layer["attn_w"], layer["attn_b"],
                           ln=(layer["ln1_g"], layer["ln1_b"]), out_dtype=jnp.bfloat16)
        # flash attention reads Q/K/V windows of qkv and writes (BT, D) directly
        attn = flash_attention(qkv, pad_mask, B=B, T=T, H=H, hd=hd, scale=scale)
        # output projection with fused residual add (residual stream stays f32)
        h2d = fused_matmul(attn, layer["proj_w"], layer["proj_b"],
                           residual=h2d, out_dtype=jnp.float32)
        # LN2 fused into FC + gelu_new
        ff = fused_matmul(h2d, layer["fc_w"], layer["fc_b"],
                          ln=(layer["ln2_g"], layer["ln2_b"]),
                          activation="gelu_new", out_dtype=jnp.bfloat16)
        h2d = fused_matmul(ff, layer["mlp_proj_w"], layer["mlp_proj_b"],
                           residual=h2d, out_dtype=jnp.float32)

    # shifted labels (HF semantics: predict token t+1 at position t; -100 = ignore)
    if labels is not None:
        shift_labels = jnp.concatenate(
            [labels[:, 1:], jnp.full((B, 1), -100, labels.dtype)], axis=1)
    else:
        shift_labels = jnp.full((B, T), -100, jnp.int32)
    shift_flat = shift_labels.reshape(BT)

    logits2d, nll = lm_head_with_loss(h2d, params["wte"], params["lnf_g"],
                                      params["lnf_b"], shift_flat, V)
    if logits2d.shape[1] != V:
        logits2d = logits2d[:, :V]          # only when vocab was padded
    logits = logits2d.reshape(B, T, V)

    loss = None
    if labels is not None:
        valid = (shift_flat != -100).astype(jnp.float32)
        loss = jnp.sum(nll * valid) / jnp.maximum(jnp.sum(valid), 1.0)
    return loss, logits


# ----------------------------- main -----------------------------

if __name__ == "__main__":
    # small synthetic GPT-2 config (hd=64 like real GPT-2 so the lane-dense head
    # grouping path is exercised)
    VOCAB, N_POS, D, N_LAYER, N_HEAD = 256, 16, 128, 2, 2
    B, T = 2, 8

    key = jax.random.PRNGKey(0)
    kp, ki = jax.random.split(key)
    params = init_gpt2_params(kp, vocab=VOCAB, n_pos=N_POS, d=D,
                              n_layer=N_LAYER, n_head=N_HEAD)

    input_ids = jax.random.randint(ki, (B, T), 0, VOCAB, dtype=jnp.int32)
    attention_mask = jnp.ones((B, T), dtype=jnp.int32)
    labels = input_ids  # standard LM objective

    loss, logits = gpt2_forward(params, input_ids, attention_mask, labels)
    jax.block_until_ready((loss, logits))

    assert logits.shape == (B, T, VOCAB)
    assert loss.shape == ()
    assert bool(jnp.isfinite(loss))
    print("KERNEL_OK")
</pallas_src>

<mosaic_0001>
module attributes {stable_mosaic.version = 11 : i64} {
  func.func @_fused_matmul_kernel(%arg0: i32, %arg1: i32, %arg2: memref<16x128xf32, #tpu.memory_space<vmem>>, %arg3: memref<128x384xbf16, #tpu.memory_space<vmem>>, %arg4: memref<1x384xf32, #tpu.memory_space<vmem>>, %arg5: memref<1x128xf32, #tpu.memory_space<vmem>>, %arg6: memref<1x128xf32, #tpu.memory_space<vmem>>, %arg7: memref<16x384xbf16, #tpu.memory_space<vmem>>, %arg8: memref<16x128xbf16, #tpu.memory_space<vmem>>) attributes {dimension_semantics = [#tpu.dimension_semantics<parallel>, #tpu.dimension_semantics<arbitrary>], iteration_bounds = array<i64: 1, 1>, scalar_prefetch = 0 : i64, scratch_operands = 1 : i64, tpu.core_type = #tpu.core_type<tc>, window_params = [{transform_indices = @transform_0, window_bounds = array<i64: 16, 128>}, {transform_indices = @transform_1, window_bounds = array<i64: 128, 384>}, {transform_indices = @transform_2, window_bounds = array<i64: 1, 384>}, {pipeline_mode = #tpu.pipeline_mode<synchronous>, transform_indices = @transform_3, window_bounds = array<i64: 1, 128>}, {pipeline_mode = #tpu.pipeline_mode<synchronous>, transform_indices = @transform_4, window_bounds = array<i64: 1, 128>}, {transform_indices = @transform_5, window_bounds = array<i64: 16, 384>}]} {
    %c0_i32 = arith.constant 0 : i32
    %0 = arith.cmpi eq, %arg1, %c0_i32 : i32
    %1 = arith.extui %0 : i1 to i32
    %c0_i32_0 = arith.constant 0 : i32
    %2 = arith.cmpi ne, %1, %c0_i32_0 : i32
    scf.if %2 {
      %c0_8 = arith.constant 0 : index
      %c0_9 = arith.constant 0 : index
      %11 = vector.load %arg2[%c0_8, %c0_9] : memref<16x128xf32, #tpu.memory_space<vmem>>, vector<16x128xf32>
      %cst_10 = arith.constant dense<0.000000e+00> : vector<16xf32>
      %12 = vector.multi_reduction <add>, %11, %cst_10 [1] : vector<16x128xf32> to vector<16xf32>
      %13 = vector.shape_cast %12 : vector<16xf32> to vector<16x1xf32>
      %cst_11 = arith.constant 1.280000e+02 : f32
      %14 = vector.broadcast %cst_11 : f32 to vector<16x1xf32>
      %15 = arith.divf %13, %14 : vector<16x1xf32>
      %16 = vector.broadcast %15 : vector<16x1xf32> to vector<16x128xf32>
      %17 = arith.subf %11, %16 : vector<16x128xf32>
      %18 = arith.mulf %17, %17 : vector<16x128xf32>
      %cst_12 = arith.constant dense<0.000000e+00> : vector<16xf32>
      %19 = vector.multi_reduction <add>, %18, %cst_12 [1] : vector<16x128xf32> to vector<16xf32>
      %20 = vector.shape_cast %19 : vector<16xf32> to vector<16x1xf32>
      %cst_13 = arith.constant 1.280000e+02 : f32
      %21 = vector.broadcast %cst_13 : f32 to vector<16x1xf32>
      %22 = arith.divf %20, %21 : vector<16x1xf32>
      %23 = vector.broadcast %15 : vector<16x1xf32> to vector<16x128xf32>
      %24 = arith.subf %11, %23 : vector<16x128xf32>
      %cst_14 = arith.constant 9.99999974E-6 : f32
      %25 = vector.broadcast %cst_14 : f32 to vector<16x1xf32>
      %26 = arith.addf %22, %25 : vector<16x1xf32>
      %27 = math.rsqrt %26 : vector<16x1xf32>
      %28 = vector.broadcast %27 : vector<16x1xf32> to vector<16x128xf32>
      %29 = arith.mulf %24, %28 : vector<16x128xf32>
      %c0_15 = arith.constant 0 : index
      %c0_16 = arith.constant 0 : index
      %30 = vector.load %arg5[%c0_15, %c0_16] : memref<1x128xf32, #tpu.memory_space<vmem>>, vector<1x128xf32>
      %31 = vector.broadcast %30 : vector<1x128xf32> to vector<16x128xf32>
      %32 = arith.mulf %29, %31 : vector<16x128xf32>
      %c0_17 = arith.constant 0 : index
      %c0_18 = arith.constant 0 : index
      %33 = vector.load %arg6[%c0_17, %c0_18] : memref<1x128xf32, #tpu.memory_space<vmem>>, vector<1x128xf32>
      %34 = vector.broadcast %33 : vector<1x128xf32> to vector<16x128xf32>
      %35 = arith.addf %32, %34 : vector<16x128xf32>
      %36 = arith.truncf %35 : vector<16x128xf32> to vector<16x128xbf16>
      %c0_19 = arith.constant 0 : index
      %c0_20 = arith.constant 0 : index
      %37 = vector.load %arg8[%c0_19, %c0_20] : memref<16x128xbf16, #tpu.memory_space<vmem>>, vector<16x128xbf16>
      tpu.vector_store %arg8[%c0_19, %c0_20], %36 {strides = array<i32>} : memref<16x128xbf16, #tpu.memory_space<vmem>>, vector<16x128xbf16>,
    } else {
    }
    %c0 = arith.constant 0 : index
    %c0_1 = arith.constant 0 : index
    %3 = vector.load %arg8[%c0, %c0_1] : memref<16x128xbf16, #tpu.memory_space<vmem>>, vector<16x128xbf16>
    %c0_2 = arith.constant 0 : index
    %c0_3 = arith.constant 0 : index
    %4 = vector.load %arg3[%c0_2, %c0_3] : memref<128x384xbf16, #tpu.memory_space<vmem>>, vector<128x384xbf16>
    %cst = arith.constant dense<0.000000e+00> : vector<16x384xf32>
    %5 = tpu.matmul %3, %4, %cst {dimension_numbers = #tpu.dot_dimension_numbers<[1], [0], [0], [1], [0, 0, 1, 1], [], []>} : vector<16x128xbf16>, vector<128x384xbf16>, vector<16x384xf32> -> vector<16x384xf32>
    %c0_4 = arith.constant 0 : index
    %c0_5 = arith.constant 0 : index
    %6 = vector.load %arg4[%c0_4, %c0_5] : memref<1x384xf32, #tpu.memory_space<vmem>>, vector<1x384xf32>
    %7 = vector.broadcast %6 : vector<1x384xf32> to vector<16x384xf32>
    %8 = arith.addf %5, %7 : vector<16x384xf32>
    %9 = arith.truncf %8 : vector<16x384xf32> to vector<16x384xbf16>
    %c0_6 = arith.constant 0 : index
    %c0_7 = arith.constant 0 : index
    %10 = vector.load %arg7[%c0_6, %c0_7] : memref<16x384xbf16, #tpu.memory_space<vmem>>, vector<16x384xbf16>
    tpu.vector_store %arg7[%c0_6, %c0_7], %9 {strides = array<i32>} : memref<16x384xbf16, #tpu.memory_space<vmem>>, vector<16x384xbf16>,
    return
  }
  func.func @transform_0(%arg0: i32, %arg1: i32) -> (i32, i32) {
    %c0_i32 = arith.constant 0 : i32
    %c0_i32_0 = arith.constant 0 : i32
    return %arg0, %c0_i32 : i32, i32
  }
  func.func @transform_1(%arg0: i32, %arg1: i32) -> (i32, i32) {
    %c0_i32 = arith.constant 0 : i32
    %c0_i32_0 = arith.constant 0 : i32
    return %c0_i32, %arg1 : i32, i32
  }
  func.func @transform_2(%arg0: i32, %arg1: i32) -> (i32, i32) {
    %c0_i32 = arith.constant 0 : i32
    %c0_i32_0 = arith.constant 0 : i32
    return %c0_i32, %arg1 : i32, i32
  }
  func.func @transform_3(%arg0: i32, %arg1: i32) -> (i32, i32) {
    %c0_i32 = arith.constant 0 : i32
    %c0_i32_0 = arith.constant 0 : i32
    %c0_i32_1 = arith.constant 0 : i32
    return %c0_i32, %c0_i32_0 : i32, i32
  }
  func.func @transform_4(%arg0: i32, %arg1: i32) -> (i32, i32) {
    %c0_i32 = arith.constant 0 : i32
    %c0_i32_0 = arith.constant 0 : i32
    %c0_i32_1 = arith.constant 0 : i32
    return %c0_i32, %c0_i32_0 : i32, i32
  }
  func.func @transform_5(%arg0: i32, %arg1: i32) -> (i32, i32) {
    %c0_i32 = arith.constant 0 : i32
    return %arg0, %arg1 : i32, i32
  }
}

</mosaic_0001>

<llo_original>
// kernel: tpu_custom_call.1
$region0: #{tpu_custom_call.1}
  #allocation0 [shape = 'u32[]', space=smem, size = 0x4, offset = 0x4, fixed_abs, tag = 'smem constant byte address 0x4 - core index']
  #allocation1 [shape = 'u32[144,128]{1,0:T(1,128)}', space=vmem, size = 0x12000, scoped, tag = 'internal scratch']
  #allocation2 [shape = 'bf16[16,128]{1,0:T(16,128)(2,1)}', space=vmem, size = 0x1000, scoped, tag = 'scratch operand']
  %s0 = inlined_call_operand.hbm [shape: f32[16,128], index: 0, kind: input, shape index: {}]
  %s1 = inlined_call_operand.hbm [shape: bf16[128,384], index: 1, kind: input, shape index: {}]
  %s2 = inlined_call_operand.vmem [shape: f32[1,384], index: 2, kind: input, shape index: {}]
  %s3 = inlined_call_operand.vmem [shape: f32[1,128], index: 3, kind: input, shape index: {}]
  %s4 = inlined_call_operand.vmem [shape: f32[1,128], index: 4, kind: input, shape index: {}]
  %s5 = inlined_call_operand.hbm [shape: bf16[16,384], index: 5, kind: output, shape index: {}]
  %s6 = sld [smem:[#allocation0]]
  $region42: #{tpu_custom_call.1} parent=0
    _
  %s8 = ssub.s32 1, %s6
  %s9 = scalar_select 0, %s8, %s6
  $region1: #{tpu_custom_call.1} parent=0
    #allocation3 [shape = 'u8[8192]{0}', space=vmem, size = 0x2000, scoped, tag = 'input window, operand 0, single buffered']
    #allocation4 [shape = 's32[1]{0}', space=sflag, size = 0x4, scoped, tag = 'scoped memory for tpu_custom_call.1']
    #allocation5 [shape = 's32[1]{0}', space=sflag, size = 0x4, scoped, tag = 'scoped memory for tpu_custom_call.1']
    #allocation6 [shape = 'u8[98304]{0}', space=vmem, size = 0x18000, scoped, tag = 'input window, operand 1, single buffered']
    #allocation7 [shape = 's32[1]{0}', space=sflag, size = 0x4, scoped, tag = 'scoped memory for tpu_custom_call.1']
    #allocation8 [shape = 'u8[12288]{0}', space=vmem, size = 0x3000, scoped, tag = 'output window, operand 0, single buffered']
    %10 = vsyncpa [#allocation4], 0
    %11 = vsyncpa [#allocation7], 0
    %12 = vsyncpa [#allocation5], 0
    // Predicated region
    $region2: #{tpu_custom_call.1} parent=1 // pred_check
      _
    $region3: #{tpu_custom_call.1} parent=1 // pred_check_branch
      %14 = sbr.rel (0) target = $region5
    $region4: #{tpu_custom_call.1} parent=1 // pred_region
      %s16 = ssub.s32 256, 256
      %17 = vsyncadd [#allocation4], %s16
      %s18 = sshll.u32 [#allocation3], 4
      %s19 = int_to_ptr.vmem [resolvable:$true] %s18
      %24 = dma.hbm_to_vmem [thread:$0]  %s0, 256, %s19, [#allocation4], 128, 128, 8
    $region5: #{tpu_custom_call.1} parent=1 // pred_fallthru
      _
    // Predicated region
    $region6: #{tpu_custom_call.1} parent=1 // pred_check
      _
    $region7: #{tpu_custom_call.1} parent=1 // pred_check_branch
      %26 = sbr.rel (0) target = $region9
    $region8: #{tpu_custom_call.1} parent=1 // pred_region
      %s28 = ssub.s32 3072, 3072
      %29 = vsyncadd [#allocation7], %s28
      %s30 = sshll.u32 [#allocation6], 4
      %s31 = int_to_ptr.vmem [resolvable:$true] %s30
      %36 = dma.hbm_to_vmem [thread:$0]  %s1, 3072, %s31, [#allocation7], 192, 192, 12
    $region9: #{tpu_custom_call.1} parent=1 // pred_fallthru
      _
    // Predicated region
    $region10: #{tpu_custom_call.1} parent=1 // pred_check
      _
    $region11: #{tpu_custom_call.1} parent=1 // pred_check_branch
      %38 = sbr.rel (0) target = $region13
    $region12: #{tpu_custom_call.1} parent=1 // pred_region
      _
    $region13: #{tpu_custom_call.1} parent=1 // pred_fallthru
      _
    // Predicated region
    $region14: #{tpu_custom_call.1} parent=1 // pred_check
      _
    $region15: #{tpu_custom_call.1} parent=1 // pred_check_branch
      %40 = sbr.rel (0) target = $region17
    $region16: #{tpu_custom_call.1} parent=1 // pred_region
      _
    $region17: #{tpu_custom_call.1} parent=1 // pred_fallthru
      _
    // Predicated region
    $region18: #{tpu_custom_call.1} parent=1 // pred_check
      _
    $region19: #{tpu_custom_call.1} parent=1 // pred_check_branch
      %42 = sbr.rel (0) target = $region21
    $region20: #{tpu_custom_call.1} parent=1 // pred_region
      _
    $region21: #{tpu_custom_call.1} parent=1 // pred_fallthru
      _
    // Predicated region
    $region22: #{tpu_custom_call.1} parent=1 // pred_check
      _
    $region23: #{tpu_custom_call.1} parent=1 // pred_check_branch
      %44 = sbr.rel (0) target = $region25
    $region24: #{tpu_custom_call.1} parent=1 // pred_region
      %45 = dma.done [#allocation4], 256
    $region25: #{tpu_custom_call.1} parent=1 // pred_fallthru
      _
    // Predicated region
    $region26: #{tpu_custom_call.1} parent=1 // pred_check
      _
    $region27: #{tpu_custom_call.1} parent=1 // pred_check_branch
      %47 = sbr.rel (0) target = $region29
    $region28: #{tpu_custom_call.1} parent=1 // pred_region
      %48 = dma.done [#allocation7], 3072
    $region29: #{tpu_custom_call.1} parent=1 // pred_fallthru
      _
    %p50 = scmp.eq.s32.totalorder 0, 0
    // Predicated region
    $region30: #{tpu_custom_call.1} parent=1 // pred_check
      %p51 = pneg %p50
    $region31: #{tpu_custom_call.1} parent=1 // pred_check_branch
      %53 = sbr.rel (%p51) target = $region33
    $region32: #{tpu_custom_call.1} parent=1 // pred_region
      %v54 = vld [vmem:[#allocation3] sm:$0xff]
      %v55 = vld [vmem:[#allocation3 + $0x8] sm:$0xff]
      %56 = vadd.xlane.f32.xlu0 %v54
      %v57 = vpop.xlane.xlu0 %56
      %58 = vadd.xlane.f32.xlu0 %v55
      %v59 = vpop.xlane.xlu0 %58
      %v60 = vrcp.pop 128.0
      %v61 = vmul.f32 %v57, %v60
      %v62 = vmul.f32 %v59, %v60
      %v63 = vsub.f32 %v54, %v61
      %v64 = vsub.f32 %v55, %v62
      %v65 = vmul.f32 %v63, %v63
      %v66 = vmul.f32 %v64, %v64
      %67 = vadd.xlane.f32.xlu0 %v65
      %v68 = vpop.xlane.xlu0 %67
      %69 = vadd.xlane.f32.xlu0 %v66
      %v70 = vpop.xlane.xlu0 %69
      %v71 = vmul.f32 %v68, %v60
      %v72 = vmul.f32 %v70, %v60
      %v73 = vadd.f32 %v71, 1e-05
      %v74 = vadd.f32 %v72, 1e-05
      %v75 = vrsqrt.pop %v73
      %v76 = vrsqrt.pop %v74
      %v77 = vmul.f32 %v63, %v75
      %v78 = vmul.f32 %v64, %v76
      %v79 = vld [vmem:[%s3] sm:$0x1]
      %v81 = vlaneseq
      %v82 = vshrl.u32 %v81, 7
      %v83 = vsub.s32 0, %v82
      %v84 = vrot.slane %v79, %v83
      %v86 = vmul.f32 %v77, %v84
      %v87 = vmul.f32 %v78, %v84
      %v88 = vld [vmem:[%s4] sm:$0x1]
      %v90 = vlaneseq
      %v91 = vshrl.u32 %v90, 7
      %v92 = vsub.s32 0, %v91
      %v93 = vrot.slane %v88, %v92
      %v95 = vadd.f32 %v86, %v93
      %v96 = vadd.f32 %v87, %v93
      %v97 = vpack.c.bf16 %v96, %v95
      %98 = vst [vmem:[#allocation2] sm:$0xff] %v97
    $region33: #{tpu_custom_call.1} parent=1 // pred_fallthru
      _
    %v99 = vld [vmem:[#allocation2] sm:$0xff]
    %v100 = vld [vmem:[#allocation6] sm:$0xff]
    %v101 = vld [vmem:[#allocation6 + $0x8] sm:$0xf]
    %v102 = vld [vmem:[#allocation6 + $0xc] sm:$0xff]
    %v103 = vld [vmem:[#allocation6 + $0x14] sm:$0xf]
    %v104 = vld [vmem:[#allocation6 + $0x18] sm:$0xff]
    %v105 = vld [vmem:[#allocation6 + $0x20] sm:$0xf]
    %v106 = vld [vmem:[#allocation6 + $0x24] sm:$0xff]
    %v107 = vld [vmem:[#allocation6 + $0x2c] sm:$0xf]
    %v108 = vld [vmem:[#allocation6 + $0x30] sm:$0xff]
    %v109 = vld [vmem:[#allocation6 + $0x38] sm:$0xf]
    %v110 = vld [vmem:[#allocation6 + $0x3c] sm:$0xff]
    %v111 = vld [vmem:[#allocation6 + $0x44] sm:$0xf]
    %v112 = vld [vmem:[#allocation6 + $0x48] sm:$0xff]
    %v113 = vld [vmem:[#allocation6 + $0x50] sm:$0xf]
    %v114 = vld [vmem:[#allocation6 + $0x54] sm:$0xff]
    %v115 = vld [vmem:[#allocation6 + $0x5c] sm:$0xf]
    %v116 = vld [vmem:[#allocation6 + $0x60] sm:$0xff]
    %v117 = vld [vmem:[#allocation6 + $0x68] sm:$0xf]
    %v118 = vld [vmem:[#allocation6 + $0x6c] sm:$0xff]
    %v119 = vld [vmem:[#allocation6 + $0x74] sm:$0xf]
    %v120 = vld [vmem:[#allocation6 + $0x78] sm:$0xff]
    %v121 = vld [vmem:[#allocation6 + $0x80] sm:$0xf]
    %v122 = vld [vmem:[#allocation6 + $0x84] sm:$0xff]
    %v123 = vld [vmem:[#allocation6 + $0x8c] sm:$0xf]
    %v124 = vld [vmem:[#allocation6 + $0x90] sm:$0xff]
    %v125 = vld [vmem:[#allocation6 + $0x98] sm:$0xf]
    %v126 = vld [vmem:[#allocation6 + $0x9c] sm:$0xff]
    %v127 = vld [vmem:[#allocation6 + $0xa4] sm:$0xf]
    %v128 = vld [vmem:[#allocation6 + $0xa8] sm:$0xff]
    %v129 = vld [vmem:[#allocation6 + $0xb0] sm:$0xf]
    %v130 = vld [vmem:[#allocation6 + $0xb4] sm:$0xff]
    %v131 = vld [vmem:[#allocation6 + $0xbc] sm:$0xf]
    %v132 = vld [vmem:[%s2] sm:$0x7]
    %v134 = vlaneseq
    %v135 = vshrl.u32 %v134, 7
    %v136 = vsub.s32 0, %v135
    %v137 = vrot.slane %v132, %v136
    %v138 = vlaneseq
    %v139 = vshrl.u32 %v138, 7
    %v140 = vsub.s32 1, %v139
    %v141 = vrot.slane %v132, %v140
    %v142 = vlaneseq
    %v143 = vshrl.u32 %v142, 7
    %v144 = vsub.s32 2, %v143
    %v145 = vrot.slane %v132, %v144
    %v181 = vunpack.c.l.b16 %v100
    %v182 = vunpack.c.h.b16 %v100
    %v183 = vunpack.c.l.b16 %v101
    %v184 = vunpack.c.l.b16 %v102
    %v185 = vunpack.c.h.b16 %v102
    %v186 = vunpack.c.l.b16 %v103
    %v187 = vunpack.c.l.b16 %v104
    %v188 = vunpack.c.h.b16 %v104
    %v189 = vunpack.c.l.b16 %v105
    %v190 = vunpack.c.l.b16 %v106
    %v191 = vunpack.c.h.b16 %v106
    %v192 = vunpack.c.l.b16 %v107
    %v193 = vunpack.c.l.b16 %v108
    %v194 = vunpack.c.h.b16 %v108
    %v195 = vunpack.c.l.b16 %v109
    %v196 = vunpack.c.l.b16 %v110
    %v197 = vunpack.c.h.b16 %v110
    %v198 = vunpack.c.l.b16 %v111
    %v199 = vunpack.c.l.b16 %v112
    %v200 = vunpack.c.h.b16 %v112
    %v201 = vunpack.c.l.b16 %v113
    %v202 = vunpack.c.l.b16 %v114
    %v203 = vunpack.c.h.b16 %v114
    %v204 = vunpack.c.l.b16 %v115
    %v205 = vunpack.c.l.b16 %v116
    %v206 = vunpack.c.h.b16 %v116
    %v207 = vunpack.c.l.b16 %v117
    %v208 = vunpack.c.l.b16 %v118
    %v209 = vunpack.c.h.b16 %v118
    %v210 = vunpack.c.l.b16 %v119
    %v211 = vunpack.c.l.b16 %v120
    %v212 = vunpack.c.h.b16 %v120
    %v213 = vunpack.c.l.b16 %v121
    %v214 = vunpack.c.l.b16 %v122
    %v215 = vunpack.c.h.b16 %v122
    %v216 = vunpack.c.l.b16 %v123
    %v217 = vunpack.c.l.b16 %v124
    %v218 = vunpack.c.h.b16 %v124
    %v219 = vunpack.c.l.b16 %v125
    %v220 = vunpack.c.l.b16 %v126
    %v221 = vunpack.c.h.b16 %v126
    %v222 = vunpack.c.l.b16 %v127
    %v223 = vunpack.c.l.b16 %v128
    %v224 = vunpack.c.h.b16 %v128
    %v225 = vunpack.c.l.b16 %v129
    %v226 = vunpack.c.l.b16 %v130
    %v227 = vunpack.c.h.b16 %v130
    %v228 = vunpack.c.l.b16 %v131
    %v229 = vpack.c.b16 %v184, %v181
    %v230 = vpack.c.b16 %v185, %v182
    %v231 = vpack.c.b16 %v186, %v183
    %v232 = vpack.c.b16 %v190, %v187
    %v233 = vpack.c.b16 %v191, %v188
    %v234 = vpack.c.b16 %v192, %v189
    %v235 = vpack.c.b16 %v196, %v193
    %v236 = vpack.c.b16 %v197, %v194
    %v237 = vpack.c.b16 %v198, %v195
    %v238 = vpack.c.b16 %v202, %v199
    %v239 = vpack.c.b16 %v203, %v200
    %v240 = vpack.c.b16 %v204, %v201
    %v241 = vpack.c.b16 %v208, %v205
    %v242 = vpack.c.b16 %v209, %v206
    %v243 = vpack.c.b16 %v210, %v207
    %v244 = vpack.c.b16 %v214, %v211
    %v245 = vpack.c.b16 %v215, %v212
    %v246 = vpack.c.b16 %v216, %v213
    %v247 = vpack.c.b16 %v220, %v217
    %v248 = vpack.c.b16 %v221, %v218
    %v249 = vpack.c.b16 %v222, %v219
    %v250 = vpack.c.b16 %v226, %v223
    %v251 = vpack.c.b16 %v227, %v224
    %v252 = vpack.c.b16 %v228, %v225
    %277 = vmatprep.subr.bf16.mxu0 %v230
    %278 = vmatpush1.bf16.msra.mxu0 %v229
    %279 = vmatprep.subr.bf16.mxu0 %v233
    %280 = vmatpush1.bf16.msra.mxu0 %v232
    %281 = vmatprep.subr.bf16.mxu0 %v236
    %282 = vmatpush1.bf16.msra.mxu0 %v235
    %283 = vmatprep.subr.bf16.mxu0 %v239
    %284 = vmatpush1.bf16.msra.mxu0 %v238
    %285 = vmatprep.subr.bf16.mxu0 %v242
    %286 = vmatpush1.bf16.msra.mxu0 %v241
    %287 = vmatprep.subr.bf16.mxu0 %v245
    %288 = vmatpush1.bf16.msra.mxu0 %v244
    %289 = vmatprep.subr.bf16.mxu0 %v248
    %290 = vmatpush1.bf16.msra.mxu0 %v247
    %291 = vmatprep.subr.bf16.mxu0 %v251
    %292 = vmatpush1.bf16.msra.mxu0 %v250
    %293 = vmatprep.subr.bf16.mxu0 0
    %294 = vmatpush1.bf16.msra.mxu0 0
    %295 = vmatprep.subr.bf16.mxu0 0
    %296 = vmatpush1.bf16.msra.mxu0 0
    %297 = vmatprep.subr.bf16.mxu0 0
    %298 = vmatpush1.bf16.msra.mxu0 0
    %299 = vmatprep.subr.bf16.mxu0 0
    %300 = vmatpush1.bf16.msra.mxu0 0
    %301 = vmatprep.subr.bf16.mxu0 0
    %302 = vmatpush1.bf16.msra.mxu0 0
    %303 = vmatprep.subr.bf16.mxu0 0
    %304 = vmatpush1.bf16.msra.mxu0 0
    %305 = vmatprep.subr.bf16.mxu0 0
    %306 = vmatpush1.bf16.msra.mxu0 0
    %307 = vmatprep.subr.bf16.mxu0 0
    %308 = vmatpush1.bf16.msra.mxu0 0
    %309 = vmatprep.mubr.bf16.mxu0 0
    %310 = vmatmul.mubr.bf16.gmra.mrb[0].mxu0 %v99
    %v311 = vpop.f32.mrb[0].mxu0
    %v312 = vadd.f32 %v137, %v311
    %v313 = vpop.f32.mrb[0].mxu0
    %v314 = vadd.f32 %v141, %v313
    %v315 = vpop.f32.mrb[0].mxu0
    %v316 = vadd.f32 %v137, %v315
    %v317 = vpop.f32.mrb[0].mxu0
    %v318 = vadd.f32 %v141, %v317
    %319 = vdwg.mxu0
    %320 = vmatprep.subr.bf16.mxu0 0
    %321 = vmatpush1.bf16.msra.mxu0 %v231
    %322 = vmatprep.subr.bf16.mxu0 0
    %323 = vmatpush1.bf16.msra.mxu0 %v234
    %324 = vmatprep.subr.bf16.mxu0 0
    %325 = vmatpush1.bf16.msra.mxu0 %v237
    %326 = vmatprep.subr.bf16.mxu0 0
    %327 = vmatpush1.bf16.msra.mxu0 %v240
    %328 = vmatprep.subr.bf16.mxu0 0
    %329 = vmatpush1.bf16.msra.mxu0 %v243
    %330 = vmatprep.subr.bf16.mxu0 0
    %331 = vmatpush1.bf16.msra.mxu0 %v246
    %332 = vmatprep.subr.bf16.mxu0 0
    %333 = vmatpush1.bf16.msra.mxu0 %v249
    %334 = vmatprep.subr.bf16.mxu0 0
    %335 = vmatpush1.bf16.msra.mxu0 %v252
    %336 = vmatprep.subr.bf16.mxu0 0
    %337 = vmatpush1.bf16.msra.mxu0 0
    %338 = vmatprep.subr.bf16.mxu0 0
    %339 = vmatpush1.bf16.msra.mxu0 0
    %340 = vmatprep.subr.bf16.mxu0 0
    %341 = vmatpush1.bf16.msra.mxu0 0
    %342 = vmatprep.subr.bf16.mxu0 0
    %343 = vmatpush1.bf16.msra.mxu0 0
    %344 = vmatprep.subr.bf16.mxu0 0
    %345 = vmatpush1.bf16.msra.mxu0 0
    %346 = vmatprep.subr.bf16.mxu0 0
    %347 = vmatpush1.bf16.msra.mxu0 0
    %348 = vmatprep.subr.bf16.mxu0 0
    %349 = vmatpush1.bf16.msra.mxu0 0
    %350 = vmatprep.subr.bf16.mxu0 0
    %351 = vmatpush1.bf16.msra.mxu0 0
    %352 = vmatprep.mubr.bf16.mxu0 0
    %353 = vmatmul.mubr.bf16.gmra.mrb[0].mxu0 %v99
    %v354 = vpop.f32.mrb[0].mxu0
    %v355 = vadd.f32 %v145, %v354
    %v356 = vpop.f32.mrb[0].mxu0
    %v357 = vpop.f32.mrb[0].mxu0
    %v358 = vadd.f32 %v145, %v357
    %v359 = vpop.f32.mrb[0].mxu0
    %360 = vdwg.mxu0
    %v361 = vpack.c.bf16 %v316, %v312
    %v362 = vpack.c.bf16 %v318, %v314
    %v363 = vpack.c.bf16 %v358, %v355
    %v367 = vunpack.c.l.b16 %v361
    %v368 = vunpack.c.l.b16 %v362
    %v369 = vunpack.c.l.b16 %v363
    %v370 = vunpack.c.h.b16 %v361
    %v371 = vunpack.c.h.b16 %v362
    %v372 = vunpack.c.h.b16 %v363
    %v373 = vpack.c.b16 %v368, %v367
    %v374 = vpack.c.b16 %v369, %v369
    %v375 = vpack.c.b16 %v371, %v370
    %v376 = vpack.c.b16 %v372, %v372
    %381 = vst [vmem:[#allocation8] sm:$0xff] %v373
    %382 = vst [vmem:[#allocation8 + $0x8] sm:$0xf] %v374
    %383 = vst [vmem:[#allocation8 + $0xc] sm:$0xff] %v375
    %384 = vst [vmem:[#allocation8 + $0x14] sm:$0xf] %v376
    // Predicated region
    $region34: #{tpu_custom_call.1} parent=1 // pred_check
      _
    $region35: #{tpu_custom_call.1} parent=1 // pred_check_branch
      %386 = sbr.rel (0) target = $region37
    $region36: #{tpu_custom_call.1} parent=1 // pred_region
      %s388 = ssub.s32 384, 384
      %389 = vsyncadd [#allocation5], %s388
      %s390 = sshll.u32 [#allocation8], 4
      %s391 = int_to_ptr.vmem [resolvable:$true] %s390
      %396 = dma.vmem_to_hbm [thread:$0]  %s391, 384, %s5, [#allocation5], 192, 192, 12
    $region37: #{tpu_custom_call.1} parent=1 // pred_fallthru
      _
    // Predicated region
    $region38: #{tpu_custom_call.1} parent=1 // pred_check
      _
    $region39: #{tpu_custom_call.1} parent=1 // pred_check_branch
      %398 = sbr.rel (0) target = $region41
    $region40: #{tpu_custom_call.1} parent=1 // pred_region
      %399 = dma.done [#allocation5], 384
    $region41: #{tpu_custom_call.1} parent=1 // pred_fallthru
      _
    %400 = vsyncpa [#allocation4], 1
    %401 = vsyncpa [#allocation7], 1
    %402 = vsyncpa [#allocation5], 1

</llo_original>
